<compile_context>
chip_gen: v7x
topology: tpu7x:2x2x1
jax: 0.10.0
libtpu: 0.0.40
codegen_flags: <defaults>
</compile_context>

<pallas_src>
import functools

import jax
import jax.numpy as jnp
from jax.experimental import pallas as pl
from jax.experimental.pallas import tpu as pltpu


def _v4_loss_kernel(idx_ref, pred_ref, table_ref, out_ref, tgt_buf, gather_sem, *, tile_b):
    """One grid step = one batch tile.

    idx_ref:    (B_pad,) int32 in SMEM (scalar prefetch) - gather indices.
    pred_ref:   (tile_b, C) VMEM tile of cls_out_w (auto-pipelined).
    table_ref:  (N, C) pseudo-label table, raw HBM ref (memory_space=pl.ANY).
    out_ref:    (1, 1, C) VMEM block of the per-tile partial-sum output.
    tgt_buf:    (tile_b, C) VMEM scratch holding the gathered soft targets.
    gather_sem: (1,) DMA semaphore shared by all row-gather copies of this tile.
    """
    i = pl.program_id(0)
    base = i * tile_b

    # ---- Fused gather: issue this tile's pseudo-label row DMAs (HBM -> VMEM). -------
    @pl.loop(0, tile_b)
    def _start(s):
        row = idx_ref[base + s]
        pltpu.make_async_copy(
            table_ref.at[pl.ds(row, 1)], tgt_buf.at[pl.ds(s, 1)], gather_sem.at[0]
        ).start()

    # ---- Overlap: log() needs only the resident pred tile, so it runs on the EUP ----
    # while the gather DMAs are still in flight.
    logp = jnp.log(pred_ref[...].astype(jnp.float32))

    # ---- Single aggregated wait: every row copy signals gather_sem with its byte ----
    # count and together they fill tgt_buf exactly, so one wait sized like the whole
    # buffer drains them all (same pattern as the upstream paged-attention kernels).
    pltpu.make_async_copy(tgt_buf, tgt_buf, gather_sem.at[0]).wait()

    target = tgt_buf[...].astype(jnp.float32)

    # Per-tile partial: reduce only the batch (sublane) axis here.  Each step writes
    # its own output block -> no cross-step dependency -> grid axis stays "parallel".
    out_ref[...] = jnp.sum(target * logp, axis=0).reshape(1, 1, -1)


def _pick_tile_b(batch8, num_class, pred_itemsize, tbl_itemsize,
                 vmem_budget_bytes=12 * 1024 * 1024, max_tile_b=512):
    """Largest multiple-of-8 divisor of `batch8` whose VMEM working set fits the budget."""
    c_pad = ((num_class + 127) // 128) * 128            # physical lane padding
    # Per batch row: double-buffered pred tile row + gather-buffer row + f32 headroom.
    per_row = c_pad * (2 * pred_itemsize + tbl_itemsize + 4)
    cap = max(8, min(max_tile_b, vmem_budget_bytes // max(per_row, 1)))
    best, t = 8, 8
    while t <= min(batch8, cap):
        if batch8 % t == 0:
            best = t
        t += 8
    return best


def v4_loss_pallas(cls_out_w, predicted_score_cls, index, *, tile_b=None):
    """-mean(sum(predicted_score_cls[index] * log(cls_out_w), axis=1)), gather fused."""
    B, C = cls_out_w.shape
    N, C2 = predicted_score_cls.shape
    assert C == C2, "class dims must match"

    b8 = ((B + 7) // 8) * 8
    if tile_b is None:
        tile_b = _pick_tile_b(b8, C, cls_out_w.dtype.itemsize,
                              predicted_score_cls.dtype.itemsize)
    assert tile_b % 8 == 0
    b_pad = ((B + tile_b - 1) // tile_b) * tile_b
    num_tiles = b_pad // tile_b

    index = index.astype(jnp.int32)
    if b_pad != B:
        # Padded rows contribute exactly zero: target_row0 * log(1.0) == 0.
        cls_out_w = jnp.pad(cls_out_w, ((0, b_pad - B), (0, 0)), constant_values=1.0)
        index = jnp.pad(index, (0, b_pad - B))

    kernel = functools.partial(_v4_loss_kernel, tile_b=tile_b)

    bytes_accessed = (
        b_pad * C * cls_out_w.dtype.itemsize             # cls_out_w stream
        + b_pad * C * predicted_score_cls.dtype.itemsize  # gathered pseudo-label rows
        + num_tiles * C * 4                               # per-tile partials
        + b_pad * 4                                       # indices
    )
    cost = pl.CostEstimate(flops=2 * b_pad * C, transcendentals=b_pad * C,
                           bytes_accessed=bytes_accessed)

    partials = pl.pallas_call(
        kernel,
        out_shape=jax.ShapeDtypeStruct((num_tiles, 1, C), jnp.float32),
        grid_spec=pltpu.PrefetchScalarGridSpec(
            num_scalar_prefetch=1,                              # index -> SMEM
            grid=(num_tiles,),
            in_specs=[
                pl.BlockSpec((tile_b, C), lambda i, idx: (i, 0)),   # cls_out_w tile
                pl.BlockSpec(memory_space=pl.ANY),                  # pseudo-label table (HBM)
            ],
            out_specs=pl.BlockSpec((1, 1, C), lambda i, idx: (i, 0, 0)),
            scratch_shapes=[
                pltpu.VMEM((tile_b, C), predicted_score_cls.dtype),  # gather buffer
                pltpu.SemaphoreType.DMA((1,)),                       # shared gather sem
            ],
        ),
        compiler_params=pltpu.CompilerParams(
            dimension_semantics=("parallel",),   # independent per-tile partials
            vmem_limit_bytes=32 * 1024 * 1024,   # safe on v5e/v6e (128 MiB) and v7x (64 MiB)
        ),
        cost_estimate=cost,
    )(index, cls_out_w, predicted_score_cls)

    # Single cheap cross-lane reduce + mean + negation, done exactly once (real B).
    return -(jnp.sum(partials) / jnp.float32(B))


class V4Loss:
    """JAX/Pallas port of the PyTorch v4Loss module (forward pass only)."""

    def __init__(self, predicted_score_cls):
        # [num_samples, num_class] table of soft pseudo-labels (rows sum to 1).
        self.predicted_score_cls1 = predicted_score_cls

    def __call__(self, cls_out_w, index):
        # `[index, :].clone().detach()`: the gather itself is fused into the kernel
        # (scalar-prefetched indices + in-kernel DMA); stop_gradient mirrors .detach().
        table = jax.lax.stop_gradient(self.predicted_score_cls1)
        return v4_loss_pallas(cls_out_w, table, index)


if __name__ == "__main__":
    key = jax.random.PRNGKey(0)
    k_tbl, k_pred, k_idx = jax.random.split(key, 3)

    num_samples = 256   # rows of predicted_score_cls1
    num_class = 128     # C (lane-aligned)
    batch = 32          # B

    # Deterministic synthetic "pseudo-label" table: rows are valid distributions.
    predicted_score_cls = jax.nn.softmax(
        jax.random.normal(k_tbl, (num_samples, num_class), dtype=jnp.float32), axis=-1
    )
    # Model's predicted class probabilities (strictly positive for log()).
    cls_out_w = jax.nn.softmax(
        jax.random.normal(k_pred, (batch, num_class), dtype=jnp.float32), axis=-1
    )
    index = jax.random.randint(k_idx, (batch,), 0, num_samples, dtype=jnp.int32)

    loss_mod = V4Loss(predicted_score_cls)
    loss = jax.block_until_ready(loss_mod(cls_out_w, index))

    # Pure-JAX reference for sanity checking.
    ref_target = predicted_score_cls[index, :]
    ref_loss = -jnp.mean(jnp.sum(ref_target * jnp.log(cls_out_w), axis=1))
    assert jnp.allclose(loss, ref_loss, rtol=1e-5, atol=1e-5), (loss, ref_loss)

    print("KERNEL_OK")
</pallas_src>

<mosaic_0001>
module attributes {stable_mosaic.version = 11 : i64} {
  func.func @_v4_loss_kernel(%arg0: i32, %arg1: memref<32xi32, #tpu.memory_space<smem>>, %arg2: memref<32x128xf32, #tpu.memory_space<vmem>>, %arg3: memref<256x128xf32, #tpu.memory_space<any>>, %arg4: memref<1x1x128xf32, #tpu.memory_space<vmem>>, %arg5: memref<32x128xf32, #tpu.memory_space<vmem>>, %arg6: memref<1x!tpu.dma_semaphore, #tpu.memory_space<semaphore_mem>>) attributes {dimension_semantics = [#tpu.dimension_semantics<parallel>], iteration_bounds = array<i64: 1>, scalar_prefetch = 1 : i64, scratch_operands = 2 : i64, tpu.core_type = #tpu.core_type<tc>, window_params = [{transform_indices = @transform_0, window_bounds = array<i64: 32, 128>}, {}, {transform_indices = @transform_2, window_bounds = array<i64: 1, 1, 128>}]} {
    %c32_i32 = arith.constant 32 : i32
    %0 = arith.muli %arg0, %c32_i32 : i32
    %c0_i32 = arith.constant 0 : i32
    %c32_i32_0 = arith.constant 32 : i32
    %1 = arith.addi %c0_i32, %c32_i32_0 : i32
    %c1_i32 = arith.constant 1 : i32
    scf.for %arg7 = %c0_i32 to %1 step %c1_i32  : i32 {
      %c1_i32_9 = arith.constant 1 : i32
      %11 = arith.muli %arg7, %c1_i32_9 : i32
      %c0_i32_10 = arith.constant 0 : i32
      %12 = arith.addi %c0_i32_10, %11 : i32
      %13 = arith.addi %0, %12 : i32
      %14 = arith.index_cast %13 : i32 to index
      %15 = memref.load %arg1[%14] : memref<32xi32, #tpu.memory_space<smem>>
      %c0_i32_11 = arith.constant 0 : i32
      %c0_i32_12 = arith.constant 0 : i32
      %16 = tpu.memref_slice %arg3[%15, %c0_i32_12] : memref<256x128xf32, #tpu.memory_space<any>> -> memref<1x128xf32, #tpu.memory_space<any>>
      %c0_i32_13 = arith.constant 0 : i32
      %17 = tpu.memref_slice %arg5[%12, %c0_i32_13] : memref<32x128xf32, #tpu.memory_space<vmem>> -> memref<1x128xf32, #tpu.memory_space<vmem>>
      %18 = tpu.memref_slice %arg6[%c0_i32_11] : memref<1x!tpu.dma_semaphore, #tpu.memory_space<semaphore_mem>> -> memref<1x!tpu.dma_semaphore, #tpu.memory_space<semaphore_mem>>
      %19 = tpu.memref_squeeze %18 : memref<1x!tpu.dma_semaphore, #tpu.memory_space<semaphore_mem>> -> memref<!tpu.dma_semaphore, #tpu.memory_space<semaphore_mem>>
      tpu.enqueue_dma source(%16 : memref<1x128xf32, #tpu.memory_space<any>>) target(%17 : memref<1x128xf32, #tpu.memory_space<vmem>>) target_semaphore(%19 : memref<!tpu.dma_semaphore, #tpu.memory_space<semaphore_mem>>)
    }
    %c32_i32_1 = arith.constant 32 : i32
    %c0 = arith.constant 0 : index
    %c0_2 = arith.constant 0 : index
    %2 = vector.load %arg2[%c0, %c0_2] : memref<32x128xf32, #tpu.memory_space<vmem>>, vector<32x128xf32>
    %3 = math.log %2 : vector<32x128xf32>
    %c0_i32_3 = arith.constant 0 : i32
    %4 = tpu.memref_slice %arg6[%c0_i32_3] : memref<1x!tpu.dma_semaphore, #tpu.memory_space<semaphore_mem>> -> memref<1x!tpu.dma_semaphore, #tpu.memory_space<semaphore_mem>>
    %5 = tpu.memref_squeeze %4 : memref<1x!tpu.dma_semaphore, #tpu.memory_space<semaphore_mem>> -> memref<!tpu.dma_semaphore, #tpu.memory_space<semaphore_mem>>
    tpu.wait_dma2 semaphore(%5 : memref<!tpu.dma_semaphore, #tpu.memory_space<semaphore_mem>>) src(%arg5 : memref<32x128xf32, #tpu.memory_space<vmem>>) dst(%arg5 : memref<32x128xf32, #tpu.memory_space<vmem>>)
    %c0_4 = arith.constant 0 : index
    %c0_5 = arith.constant 0 : index
    %6 = vector.load %arg5[%c0_4, %c0_5] : memref<32x128xf32, #tpu.memory_space<vmem>>, vector<32x128xf32>
    %7 = arith.mulf %6, %3 : vector<32x128xf32>
    %cst = arith.constant dense<0.000000e+00> : vector<128xf32>
    %8 = vector.multi_reduction <add>, %7, %cst [0] : vector<32x128xf32> to vector<128xf32>
    %9 = vector.shape_cast %8 : vector<128xf32> to vector<1x1x128xf32>
    %c0_6 = arith.constant 0 : index
    %c0_7 = arith.constant 0 : index
    %c0_8 = arith.constant 0 : index
    %10 = vector.load %arg4[%c0_6, %c0_7, %c0_8] : memref<1x1x128xf32, #tpu.memory_space<vmem>>, vector<1x1x128xf32>
    tpu.vector_store %arg4[%c0_6, %c0_7, %c0_8], %9 {strides = array<i32>} : memref<1x1x128xf32, #tpu.memory_space<vmem>>, vector<1x1x128xf32>,
    return
  }
  func.func @transform_0(%arg0: i32, %arg1: memref<32xi32, #tpu.memory_space<smem>>) -> (i32, i32) {
    %c0_i32 = arith.constant 0 : i32
    %c0_i32_0 = arith.constant 0 : i32
    return %arg0, %c0_i32 : i32, i32
  }
  func.func @transform_2(%arg0: i32, %arg1: memref<32xi32, #tpu.memory_space<smem>>) -> (i32, i32, i32) {
    %c0_i32 = arith.constant 0 : i32
    %c0_i32_0 = arith.constant 0 : i32
    %c0_i32_1 = arith.constant 0 : i32
    return %arg0, %c0_i32, %c0_i32_0 : i32, i32, i32
  }
}

</mosaic_0001>

<llo_original>
// kernel: tpu_custom_call.1
$region0: #{tpu_custom_call.1}
  #allocation0 [shape = 'u32[]', space=smem, size = 0x4, offset = 0x4, fixed_abs, tag = 'smem constant byte address 0x4 - core index']
  #allocation1 [shape = 'u32[144,128]{1,0:T(1,128)}', space=vmem, size = 0x12000, scoped, tag = 'internal scratch']
  #allocation2 [shape = 'f32[32,128]{1,0:T(8,128)}', space=vmem, size = 0x4000, scoped, tag = 'scratch operand']
  #allocation3 [shape = 's32[1]{0}', space=sflag, size = 0x4, scoped, tag = 'scratch operand']
  #allocation4 [shape = 's32[1]{0}', space=sflag, size = 0x4, scoped, tag = 'scoped memory for tpu_custom_call.1']
  #allocation5 [shape = 'u8[512]{0}', space=smem, size = 0x200, scoped, tag = 'prefetched SMEM operand 0']
  #allocation10 [shape = 's32[]', space=sflag, size = 0x4, offset = 0, fixed_abs, tag = 'sflag constant byte address 0x0 - dummy sync flag']
  #allocation11 [shape = 's32[]', space=sflag, size = 0x4, offset = 0, fixed_abs, tag = 'sflag constant byte address 0x0 - dummy sync flag']
  #allocation12 [shape = 'u32[]', space=smem, size = 0x4, offset = 0x44, fixed_abs, tag = 'smem constant byte address 0x44 - assertion arg 0']
  #allocation13 [shape = 'u32[]', space=smem, size = 0x4, offset = 0x48, fixed_abs, tag = 'smem constant byte address 0x48 - assertion arg 1']
  %s0 = inlined_call_operand.hbm [shape: s32[32], index: 0, kind: input, shape index: {}]
  %s1 = inlined_call_operand.hbm [shape: f32[32,128], index: 1, kind: input, shape index: {}]
  %s2 = inlined_call_operand.hbm [shape: f32[256,128], index: 2, kind: input, shape index: {}]
  %s3 = inlined_call_operand.hbm [shape: f32[1,1,128], index: 3, kind: output, shape index: {}]
  %s4 = sld [smem:[#allocation0]]
  $region29: #{tpu_custom_call.1} parent=0
    _
  %s6 = ssub.s32 1, %s4
  %s7 = scalar_select 0, %s6, %s4
  %9 = dma.hbm_to_smem %s0, 16, [#allocation5], [#allocation4]
  %10 = dma.done [#allocation4], 16
  %11 = sfence
  $region1: #{tpu_custom_call.1} parent=0
    #allocation6 [shape = 'u8[16384]{0}', space=vmem, size = 0x4000, scoped, tag = 'input window, operand 1, single buffered']
    #allocation7 [shape = 's32[1]{0}', space=sflag, size = 0x4, scoped, tag = 'scoped memory for tpu_custom_call.1']
    #allocation8 [shape = 's32[1]{0}', space=sflag, size = 0x4, scoped, tag = 'scoped memory for tpu_custom_call.1']
    #allocation9 [shape = 'u8[512]{0}', space=vmem, size = 0x400, scoped, tag = 'output window, operand 0, single buffered']
    %12 = vsyncpa [#allocation7], 0
    %13 = vsyncpa [#allocation8], 0
    // Predicated region
    $region2: #{tpu_custom_call.1} parent=1 // pred_check
      _
    $region3: #{tpu_custom_call.1} parent=1 // pred_check_branch
      %15 = sbr.rel (0) target = $region5
    $region4: #{tpu_custom_call.1} parent=1 // pred_region
      %s17 = ssub.s32 512, 512
      %18 = vsyncadd [#allocation7], %s17
      %s19 = sshll.u32 [#allocation6], 4
      %s20 = int_to_ptr.vmem [resolvable:$true] %s19
      %25 = dma.hbm_to_vmem [thread:$0]  %s1, 512, %s20, [#allocation7], 128, 128, 8
    $region5: #{tpu_custom_call.1} parent=1 // pred_fallthru
      _
    // Predicated region
    $region6: #{tpu_custom_call.1} parent=1 // pred_check
      _
    $region7: #{tpu_custom_call.1} parent=1 // pred_check_branch
      %27 = sbr.rel (0) target = $region9
    $region8: #{tpu_custom_call.1} parent=1 // pred_region
      %28 = dma.done [#allocation7], 512
    $region9: #{tpu_custom_call.1} parent=1 // pred_fallthru
      _
    %s29 = smul.u32 0, 32
    loop: start=0, step=1, limit=32
    $region10: #{tpu_custom_call.1} parent=1 // loop_pre_header
      _
    $region11: #{tpu_custom_call.1} parent=1 // loop_header
      %s31 = sphi 0, %s35
      %p32 = scmp.ge.s32.totalorder %s31, 32
    $region12: #{tpu_custom_call.1} parent=1 // loop_header_branch
      %34 = sbr.rel (%p32) target = $region16
    $region13: #{tpu_custom_call.1} parent=1 // loop_body
      %s36 = sadd.s32 %s29, %s31
      %s37 = sld [smem:[#allocation5 + %s36]]
      %s38 = smul.addr %s37, 16
      %s39 = scalar_lea.hbm %s2, %s38
      %s40 = scalar_lea.vmem [#allocation2], %s31
      // Predicated region
      $region17: #{tpu_custom_call.1} parent=13 // pred_check
        _
      $region18: #{tpu_custom_call.1} parent=13 // pred_check_branch
        %42 = sbr.rel target = $region20
      $region19: #{tpu_custom_call.1} parent=13 // pred_region
        %43 = sst [smem:[#allocation12]] [#allocation11]
        %44 = sst [smem:[#allocation13]] [#allocation10]
      $region20: #{tpu_custom_call.1} parent=13 // pred_fallthru
        _
      %46 = shalt.err (0)
      %s48 = sshll.u32 %s40, 4
      %s49 = int_to_ptr.vmem [resolvable:$true] %s48
      %51 = dma.hbm_to_vmem [thread:$0]  %s39, 16, %s49, [#allocation3]
    $region14: #{tpu_custom_call.1} parent=1 // loop_footer
      %s35 = sadd.s32 1, %s31
    $region15: #{tpu_custom_call.1} parent=1 // loop_footer_branch
      %30 = sbr.rel target = $region11
    $region16: #{tpu_custom_call.1} parent=1 // loop_exit
      _
    %v52 = vld [vmem:[#allocation6] sm:$0xff]
    %v53 = vld [vmem:[#allocation6 + $0x8] sm:$0xff]
    %v54 = vld [vmem:[#allocation6 + $0x10] sm:$0xff]
    %v55 = vld [vmem:[#allocation6 + $0x18] sm:$0xff]
    %v56 = vlog2.pop %v52
    %v57 = vmul.f32 %v56, 0.6931472
    %v58 = vlog2.pop %v53
    %v59 = vmul.f32 %v58, 0.6931472
    %v60 = vlog2.pop %v54
    %v61 = vmul.f32 %v60, 0.6931472
    %v62 = vlog2.pop %v55
    %v63 = vmul.f32 %v62, 0.6931472
    %s64 = smul.u32 32, 1
    %s65 = sshll.u32 %s64, 4
    %66 = dma.done [#allocation3], %s65
    %v67 = vld [vmem:[#allocation2] sm:$0xff]
    %v68 = vld [vmem:[#allocation2 + $0x8] sm:$0xff]
    %v69 = vld [vmem:[#allocation2 + $0x10] sm:$0xff]
    %v70 = vld [vmem:[#allocation2 + $0x18] sm:$0xff]
    %v71 = vmul.f32 %v67, %v57
    %v72 = vmul.f32 %v68, %v59
    %v73 = vmul.f32 %v69, %v61
    %v74 = vmul.f32 %v70, %v63
    %v75 = vadd.f32 %v71, %v72
    %v76 = vadd.f32 %v75, %v73
    %v77 = vadd.f32 %v76, %v74
    %v78 = vrot.slane %v77, 4
    %v79 = vadd.f32 %v77, %v78
    %v80 = vrot.slane %v79, 2
    %v81 = vadd.f32 %v79, %v80
    %v82 = vrot.slane %v81, 1
    %v83 = vadd.f32 %v81, %v82
    %84 = vst [vmem:[#allocation9] sm:$0x1] %v83
    // Predicated region
    $region21: #{tpu_custom_call.1} parent=1 // pred_check
      _
    $region22: #{tpu_custom_call.1} parent=1 // pred_check_branch
      %86 = sbr.rel (0) target = $region24
    $region23: #{tpu_custom_call.1} parent=1 // pred_region
      %s88 = ssub.s32 16, 16
      %89 = vsyncadd [#allocation8], %s88
      %s91 = sshll.u32 [#allocation9], 4
      %s92 = int_to_ptr.vmem [resolvable:$true] %s91
      %94 = dma.vmem_to_hbm [thread:$0]  %s92, 16, %s3, [#allocation8]
    $region24: #{tpu_custom_call.1} parent=1 // pred_fallthru
      _
    // Predicated region
    $region25: #{tpu_custom_call.1} parent=1 // pred_check
      _
    $region26: #{tpu_custom_call.1} parent=1 // pred_check_branch
      %96 = sbr.rel (0) target = $region28
    $region27: #{tpu_custom_call.1} parent=1 // pred_region
      %97 = dma.done [#allocation8], 16
    $region28: #{tpu_custom_call.1} parent=1 // pred_fallthru
      _
    %98 = vsyncpa [#allocation7], 1
    %99 = vsyncpa [#allocation8], 1
  %100 = vsyncmov [#allocation3]
  %s101 = vpop.sfrf %100
  %p102 = scmp.eq.s32.totalorder %s101, 0
  %p103 = pneg %p102
  %105 = shalt.err (%p103)

</llo_original>
